<compile_context>
chip_gen: v5e
topology: v5e:2x2
jax: 0.10.0
libtpu: 0.0.40
codegen_flags: <defaults>
</compile_context>

<pallas_src>
import jax
import jax.numpy as jnp
from jax.experimental import pallas as pl
from jax.experimental.pallas import tpu as pltpu


FEATURE_DIM = 128   # 'sift'
HIDDEN = 256
OUT_DIM = 512
ACC_ROWS = 8        # ones-rows fed to the MXU reduce (full sublane tile)


def _aggregate_kernel(inv_n):
    """Streamed MXU column-sum over descriptors + mean + 2-layer MLP."""

    def kernel(desc_ref, w1_ref, b1_ref, w2_ref, b2_ref, out_ref, acc_ref):
        k = pl.program_id(1)  # reduction axis (last grid axis)

        @pl.when(k == 0)
        def _():
            acc_ref[...] = jnp.zeros_like(acc_ref)

        # Per-chunk column sum via the MXU: ones(bb, 8, chunk) @ desc(bb, chunk, D).
        # All 8 identical ones-rows produce the same per-batch column sum; a full
        # 8-sublane LHS tile costs nothing extra (the MXU pads M to 8 anyway) and
        # keeps every operand/result on standard (8, 128) tiles.  int8 values are
        # exactly representable in bf16, and the MXU accumulates in f32, so the
        # sum is exact.  This keeps the reduction off the VPU so int8 streaming
        # stays HBM-bound on v7x.
        d = desc_ref[...]
        mm_dtype = jnp.float32 if d.dtype == jnp.float32 else jnp.bfloat16
        d = d.astype(mm_dtype)
        ones = jnp.ones((d.shape[0], ACC_ROWS, d.shape[1]), dtype=mm_dtype)
        acc_ref[...] += jnp.einsum('brc,bcd->brd', ones, d,
                                   preferred_element_type=jnp.float32)

        # Last chunk: mean + Linear(128,256) -> ReLU -> Linear(256,512).
        @pl.when(k == pl.num_programs(1) - 1)
        def _():
            mean = acc_ref[...][:, 0, :] * inv_n                    # (bb, 128) f32
            w_dtype = w1_ref.dtype                                  # bf16 preferred
            h = jnp.dot(mean.astype(w_dtype), w1_ref[...],
                        preferred_element_type=jnp.float32) + b1_ref[...]
            h = jnp.maximum(h, 0.0)
            o = jnp.dot(h.astype(w_dtype), w2_ref[...],
                        preferred_element_type=jnp.float32) + b2_ref[...]
            out_ref[...] = o.astype(out_ref.dtype)

    return kernel


def _vmem_capacity_bytes():
    """Per-core VMEM capacity; conservative fallback (v7x = 64 MiB per TC)."""
    try:
        return int(pltpu.get_tpu_info().vmem_capacity_bytes)
    except Exception:
        return 64 * 1024 * 1024


def _round_up(x, m):
    return -(-x // m) * m


def _choose_batch_block(b, cap=64):
    """Largest divisor of b (preferring multiples of 8) within `cap`.  For
    b >= 16 the cap shrinks to b//2 so the leading "parallel" grid axis has at
    least 2 blocks and both v7x TensorCores get work; larger blocks amortize
    the ~0.35 us per-grid-step overhead on v5e/v6e."""
    limit = max(1, min(cap, b // 2 if b >= 16 else b))
    divisors = [d for d in range(1, limit + 1) if b % d == 0]
    mult8 = [d for d in divisors if d % 8 == 0]
    return (mult8 or divisors)[-1]


def _choose_chunk(n, batch_block, dtype_bytes, align, per_buffer_budget):
    """Largest multiple of `align` whose single descriptor buffer fits within
    `per_buffer_budget`.  Prefers an exact divisor of n; otherwise the caller
    zero-pads n up to a multiple of the returned chunk (no whole-N fallback)."""
    row_bytes = batch_block * FEATURE_DIM * dtype_bytes
    cap = max(align, (per_buffer_budget // max(row_bytes, 1)) // align * align)
    cap = min(cap, _round_up(n, align))
    c = cap
    while c >= align:
        if n % c == 0:
            return c
        c -= align
    return cap  # no aligned divisor within budget: caller pads n


def local_feature_forward(descriptors, w1, b1, w2, b2, *,
                          chunk=None, batch_block=None):
    """descriptors: (B, N, 128) int8/uint8/bf16/f32 -> (B, 512) float32.

    SIFT descriptors are integer-valued in [0, 255]; ship them to the device
    already narrowed (int8/uint8 preferred) — the kernel upcasts internally and
    accumulates in f32, so the mean is exact for integer descriptors.
    """
    B, N, D = descriptors.shape
    assert D == FEATURE_DIM

    dtype_bytes = jnp.dtype(descriptors.dtype).itemsize
    # Sub-32-bit dtypes pack along sublanes: bf16 chunks need %16, int8 %32.
    align = {1: 32, 2: 16}.get(dtype_bytes, 8)

    if batch_block is None:
        batch_block = _choose_batch_block(B)
    assert B % batch_block == 0, (B, batch_block)

    vmem_cap = _vmem_capacity_bytes()
    # ~2 MiB per descriptor pipeline buffer: HBM efficiency plateaus past
    # ~1-2 MiB, and staying small keeps 2-3 stream buffers plus the bf16 upcast
    # temporary and ones operand well under v7x's 64 MiB per-core VMEM.
    per_buffer_budget = min(2 * 1024 * 1024, vmem_cap // 16)
    derived_cap = _choose_chunk(N, batch_block, dtype_bytes, align,
                                per_buffer_budget)
    if chunk is None:
        chunk = derived_cap
    else:
        # Manually tuned chunks (e.g. tuned against v5e/v6e's 128 MiB VMEM) are
        # clamped to this generation's budget.
        chunk = max(align, (min(chunk, derived_cap) // align) * align)

    # Zero-pad the descriptor axis if needed (zeros don't affect the sum; the
    # mean still divides by the true N).
    n_pad = (-N) % chunk
    if n_pad:
        # TODO(synk): prefer padding on the host (the cv2 path already zero-pads
        # to num_features), which makes this device-side pass unnecessary.
        descriptors = jnp.pad(descriptors, ((0, 0), (0, n_pad), (0, 0)))
    n_padded = N + n_pad

    b1 = b1.reshape(1, HIDDEN).astype(jnp.float32)
    b2 = b2.reshape(1, OUT_DIM).astype(jnp.float32)

    grid = (B // batch_block, n_padded // chunk)
    total_steps = grid[0] * grid[1]
    kernel = _aggregate_kernel(1.0 / float(N))

    mm_bytes = 4 if descriptors.dtype == jnp.float32 else 2
    desc_block_bytes = batch_block * chunk * D * dtype_bytes
    # Deeper buffering hides DMA issue latency when per-step transfers are small.
    n_desc_bufs = 3 if (desc_block_bytes < 512 * 1024 and total_steps >= 3) else 2

    w_bytes = jnp.dtype(w1.dtype).itemsize
    weight_bytes = ((D * HIDDEN + HIDDEN * OUT_DIM) * w_bytes
                    + (HIDDEN + OUT_DIM) * 4)
    vmem_needed = (n_desc_bufs * desc_block_bytes               # streamed desc buffers
                   + batch_block * chunk * D * mm_bytes         # upcast temp for MXU reduce
                   + batch_block * ACC_ROWS * chunk * mm_bytes  # ones LHS operand
                   + 2 * batch_block * ACC_ROWS * D * 4         # einsum result + acc scratch
                   + weight_bytes                               # single-buffered MLP params
                   + 2 * batch_block * OUT_DIM * 4              # output double buffer
                   + 2 * batch_block * HIDDEN * 4)              # MLP intermediates
    vmem_limit = int(min(max(2 * vmem_needed, 32 * 1024 * 1024),
                         max(vmem_cap, 32 * 1024 * 1024)))

    cost = pl.CostEstimate(
        flops=2 * B * n_padded * D + 2 * B * (D * HIDDEN + HIDDEN * OUT_DIM),
        transcendentals=0,
        bytes_accessed=(B * n_padded * D * dtype_bytes + weight_bytes
                        + B * OUT_DIM * 4),
    )

    const = pl.Buffered(1)  # parameters never change across the grid

    return pl.pallas_call(
        kernel,
        out_shape=jax.ShapeDtypeStruct((B, OUT_DIM), jnp.float32),
        grid_spec=pltpu.PrefetchScalarGridSpec(
            num_scalar_prefetch=0,
            grid=grid,
            in_specs=[
                # streamed descriptor chunks
                pl.BlockSpec((batch_block, chunk, D), lambda i, k: (i, k, 0),
                             pipeline_mode=pl.Buffered(n_desc_bufs)),
                # constant MLP parameters: single-buffered
                pl.BlockSpec((D, HIDDEN), lambda i, k: (0, 0), pipeline_mode=const),
                pl.BlockSpec((1, HIDDEN), lambda i, k: (0, 0), pipeline_mode=const),
                pl.BlockSpec((HIDDEN, OUT_DIM), lambda i, k: (0, 0), pipeline_mode=const),
                pl.BlockSpec((1, OUT_DIM), lambda i, k: (0, 0), pipeline_mode=const),
            ],
            out_specs=pl.BlockSpec((batch_block, OUT_DIM), lambda i, k: (i, 0)),
            scratch_shapes=[pltpu.VMEM((batch_block, ACC_ROWS, FEATURE_DIM),
                                       jnp.float32)],
        ),
        compiler_params=pltpu.CompilerParams(
            dimension_semantics=("parallel", "arbitrary"),  # reduction axis last
            vmem_limit_bytes=vmem_limit,
        ),
        cost_estimate=cost,
    )(descriptors, w1, b1, w2, b2)


def make_synthetic_descriptors(x, num_features, key):
    """Stand-in for cv2 SIFT descriptor extraction (CPU-only library).

    Produces deterministic, input-dependent SIFT-like descriptors
    (B, num_features, 128) directly as int8 — real SIFT descriptors are
    integer-valued (0..255), so they should reach the device already narrowed
    rather than being cast in a standalone device-side pass.
    """
    # TODO(synk): cv2.SIFT/ORB detectAndCompute has no Pallas/TPU equivalent;
    # descriptors are synthesized deterministically instead.
    B = x.shape[0]
    flat = x.reshape(B, -1)                                      # (B, C*H*W)
    proj = jax.random.normal(key, (flat.shape[1], num_features * FEATURE_DIM),
                             dtype=jnp.float32) * 0.25
    desc = jnp.abs(flat @ proj).reshape(B, num_features, FEATURE_DIM)
    return jnp.clip(desc * 16.0, 0.0, 127.0).astype(jnp.int8)


if __name__ == "__main__":
    key = jax.random.PRNGKey(0)
    k_x, k_proj, k_w1, k_b1, k_w2, k_b2 = jax.random.split(key, 6)

    # Small shapes consistent with the module's forward: x is (B, C, H, W).
    B, C, H, W = 2, 3, 16, 16
    num_features = 96   # small stand-in for the default 2000 (multiple of 32)

    x = jax.random.uniform(k_x, (B, C, H, W), dtype=jnp.float32)

    # Descriptor extraction (non-TPU part, simulated deterministically);
    # produced in int8 at the source — no device-side narrowing pass.
    descriptors = make_synthetic_descriptors(x, num_features, k_proj)

    # Aggregator params: Linear(128,256) -> ReLU -> Linear(256,512), stored
    # (in, out).  Weights in bf16 (halves constant HBM traffic, MXU-native on
    # v5e/v6e/v7x); biases f32; all accumulation in f32.
    w1 = (jax.random.normal(k_w1, (FEATURE_DIM, HIDDEN), dtype=jnp.float32)
          * 0.05).astype(jnp.bfloat16)
    b1 = jax.random.normal(k_b1, (1, HIDDEN), dtype=jnp.float32) * 0.01
    w2 = (jax.random.normal(k_w2, (HIDDEN, OUT_DIM), dtype=jnp.float32)
          * 0.05).astype(jnp.bfloat16)
    b2 = jax.random.normal(k_b2, (1, OUT_DIM), dtype=jnp.float32) * 0.01

    out = jax.block_until_ready(local_feature_forward(descriptors, w1, b1, w2, b2))

    # Pure-JAX reference of the hot path with identical dtype choices.
    # TODO(synk): relative to the all-f32 PyTorch module this uses int8
    # descriptors + bf16 weights (f32 accumulation) — exact for integer-valued
    # SIFT descriptors, negligible error for this MLP.
    mean = descriptors.astype(jnp.float32).sum(axis=1) * (1.0 / num_features)
    h = jnp.dot(mean.astype(jnp.bfloat16), w1,
                preferred_element_type=jnp.float32) + b1
    h = jnp.maximum(h, 0.0)
    ref = jnp.dot(h.astype(jnp.bfloat16), w2,
                  preferred_element_type=jnp.float32) + b2

    assert out.shape == (B, OUT_DIM), out.shape
    assert jnp.allclose(out, ref, atol=5e-2, rtol=2e-2), (
        "mismatch vs reference, max abs err = "
        f"{float(jnp.max(jnp.abs(out - ref)))}")

    print("KERNEL_OK")
</pallas_src>

<mosaic_0001>
module attributes {stable_mosaic.version = 11 : i64} {
  func.func @kernel(%arg0: i32, %arg1: i32, %arg2: memref<2x96x128xi8, #tpu.memory_space<vmem>>, %arg3: memref<128x256xbf16, #tpu.memory_space<vmem>>, %arg4: memref<1x256xf32, #tpu.memory_space<vmem>>, %arg5: memref<256x512xbf16, #tpu.memory_space<vmem>>, %arg6: memref<1x512xf32, #tpu.memory_space<vmem>>, %arg7: memref<2x512xf32, #tpu.memory_space<vmem>>, %arg8: memref<2x8x128xf32, #tpu.memory_space<vmem>>) attributes {dimension_semantics = [#tpu.dimension_semantics<parallel>, #tpu.dimension_semantics<arbitrary>], iteration_bounds = array<i64: 1, 1>, scalar_prefetch = 0 : i64, scratch_operands = 1 : i64, tpu.core_type = #tpu.core_type<tc>, window_params = [{pipeline_mode = #tpu.pipeline_mode<double_buffered>, transform_indices = @transform_0, window_bounds = array<i64: 2, 96, 128>}, {pipeline_mode = #tpu.pipeline_mode<synchronous>, transform_indices = @transform_1, window_bounds = array<i64: 128, 256>}, {pipeline_mode = #tpu.pipeline_mode<synchronous>, transform_indices = @transform_2, window_bounds = array<i64: 1, 256>}, {pipeline_mode = #tpu.pipeline_mode<synchronous>, transform_indices = @transform_3, window_bounds = array<i64: 256, 512>}, {pipeline_mode = #tpu.pipeline_mode<synchronous>, transform_indices = @transform_4, window_bounds = array<i64: 1, 512>}, {transform_indices = @transform_5, window_bounds = array<i64: 2, 512>}]} {
    %c0_i32 = arith.constant 0 : i32
    %0 = arith.cmpi eq, %arg1, %c0_i32 : i32
    %1 = arith.extui %0 : i1 to i32
    %c0_i32_0 = arith.constant 0 : i32
    %2 = arith.cmpi ne, %1, %c0_i32_0 : i32
    scf.if %2 {
      %cst_12 = arith.constant 0.000000e+00 : f32
      %13 = vector.broadcast %cst_12 : f32 to vector<2x8x128xf32>
      %c0_13 = arith.constant 0 : index
      %c0_14 = arith.constant 0 : index
      %c0_15 = arith.constant 0 : index
      %14 = vector.load %arg8[%c0_13, %c0_14, %c0_15] : memref<2x8x128xf32, #tpu.memory_space<vmem>>, vector<2x8x128xf32>
      tpu.vector_store %arg8[%c0_13, %c0_14, %c0_15], %13 {strides = array<i32>} : memref<2x8x128xf32, #tpu.memory_space<vmem>>, vector<2x8x128xf32>,
    } else {
    }
    %c0 = arith.constant 0 : index
    %c0_1 = arith.constant 0 : index
    %c0_2 = arith.constant 0 : index
    %3 = vector.load %arg2[%c0, %c0_1, %c0_2] : memref<2x96x128xi8, #tpu.memory_space<vmem>>, vector<2x96x128xi8>
    %4 = arith.sitofp %3 : vector<2x96x128xi8> to vector<2x96x128xbf16>
    %cst = arith.constant 1.000000e+00 : bf16
    %5 = vector.broadcast %cst : bf16 to vector<2x8x96xbf16>
    %c0_3 = arith.constant 0 : index
    %c0_4 = arith.constant 0 : index
    %c0_5 = arith.constant 0 : index
    %6 = vector.load %arg8[%c0_3, %c0_4, %c0_5] : memref<2x8x128xf32, #tpu.memory_space<vmem>>, vector<2x8x128xf32>
    "tpu.trace_start"() <{level = 10 : i32, message = "brc,bcd->brd"}> : () -> ()
    %cst_6 = arith.constant dense<0.000000e+00> : vector<2x8x128xf32>
    %7 = tpu.matmul %5, %4, %cst_6 {dimension_numbers = #tpu.dot_dimension_numbers<[2], [1], [1], [2], [0, 0, 0, 1, 1, 2], [0], [0]>} : vector<2x8x96xbf16>, vector<2x96x128xbf16>, vector<2x8x128xf32> -> vector<2x8x128xf32>
    "tpu.trace_stop"() : () -> ()
    %8 = arith.addf %6, %7 : vector<2x8x128xf32>
    %c0_7 = arith.constant 0 : index
    %c0_8 = arith.constant 0 : index
    %c0_9 = arith.constant 0 : index
    %9 = vector.load %arg8[%c0_7, %c0_8, %c0_9] : memref<2x8x128xf32, #tpu.memory_space<vmem>>, vector<2x8x128xf32>
    tpu.vector_store %arg8[%c0_7, %c0_8, %c0_9], %8 {strides = array<i32>} : memref<2x8x128xf32, #tpu.memory_space<vmem>>, vector<2x8x128xf32>,
    %c0_i32_10 = arith.constant 0 : i32
    %10 = arith.cmpi eq, %arg1, %c0_i32_10 : i32
    %11 = arith.extui %10 : i1 to i32
    %c0_i32_11 = arith.constant 0 : i32
    %12 = arith.cmpi ne, %11, %c0_i32_11 : i32
    scf.if %12 {
      %c0_12 = arith.constant 0 : index
      %c0_13 = arith.constant 0 : index
      %c0_14 = arith.constant 0 : index
      %13 = vector.load %arg8[%c0_12, %c0_13, %c0_14] : memref<2x8x128xf32, #tpu.memory_space<vmem>>, vector<2x8x128xf32>
      %14 = vector.extract_strided_slice %13 {offsets = [0, 0, 0], sizes = [2, 1, 128], strides = [1, 1, 1]} : vector<2x8x128xf32> to vector<2x1x128xf32>
      %15 = vector.shape_cast %14 : vector<2x1x128xf32> to vector<2x128xf32>
      %cst_15 = arith.constant 0.010416667 : f32
      %16 = vector.broadcast %cst_15 : f32 to vector<2x128xf32>
      %17 = arith.mulf %15, %16 : vector<2x128xf32>
      %18 = arith.truncf %17 : vector<2x128xf32> to vector<2x128xbf16>
      %c0_16 = arith.constant 0 : index
      %c0_17 = arith.constant 0 : index
      %19 = vector.load %arg3[%c0_16, %c0_17] : memref<128x256xbf16, #tpu.memory_space<vmem>>, vector<128x256xbf16>
      %cst_18 = arith.constant dense<0.000000e+00> : vector<2x256xf32>
      %20 = tpu.matmul %18, %19, %cst_18 {dimension_numbers = #tpu.dot_dimension_numbers<[1], [0], [0], [1], [0, 0, 1, 1], [], []>} : vector<2x128xbf16>, vector<128x256xbf16>, vector<2x256xf32> -> vector<2x256xf32>
      %c0_19 = arith.constant 0 : index
      %c0_20 = arith.constant 0 : index
      %21 = vector.load %arg4[%c0_19, %c0_20] : memref<1x256xf32, #tpu.memory_space<vmem>>, vector<1x256xf32>
      %22 = vector.broadcast %21 : vector<1x256xf32> to vector<2x256xf32>
      %23 = arith.addf %20, %22 : vector<2x256xf32>
      %cst_21 = arith.constant 0.000000e+00 : f32
      %24 = vector.broadcast %cst_21 : f32 to vector<2x256xf32>
      %25 = arith.maximumf %23, %24 : vector<2x256xf32>
      %26 = arith.truncf %25 : vector<2x256xf32> to vector<2x256xbf16>
      %c0_22 = arith.constant 0 : index
      %c0_23 = arith.constant 0 : index
      %27 = vector.load %arg5[%c0_22, %c0_23] : memref<256x512xbf16, #tpu.memory_space<vmem>>, vector<256x512xbf16>
      %cst_24 = arith.constant dense<0.000000e+00> : vector<2x512xf32>
      %28 = tpu.matmul %26, %27, %cst_24 {dimension_numbers = #tpu.dot_dimension_numbers<[1], [0], [0], [1], [0, 0, 1, 1], [], []>} : vector<2x256xbf16>, vector<256x512xbf16>, vector<2x512xf32> -> vector<2x512xf32>
      %c0_25 = arith.constant 0 : index
      %c0_26 = arith.constant 0 : index
      %29 = vector.load %arg6[%c0_25, %c0_26] : memref<1x512xf32, #tpu.memory_space<vmem>>, vector<1x512xf32>
      %30 = vector.broadcast %29 : vector<1x512xf32> to vector<2x512xf32>
      %31 = arith.addf %28, %30 : vector<2x512xf32>
      %c0_27 = arith.constant 0 : index
      %c0_28 = arith.constant 0 : index
      %32 = vector.load %arg7[%c0_27, %c0_28] : memref<2x512xf32, #tpu.memory_space<vmem>>, vector<2x512xf32>
      tpu.vector_store %arg7[%c0_27, %c0_28], %31 {strides = array<i32>} : memref<2x512xf32, #tpu.memory_space<vmem>>, vector<2x512xf32>,
    } else {
    }
    return
  }
  func.func @transform_0(%arg0: i32, %arg1: i32) -> (i32, i32, i32) {
    %c0_i32 = arith.constant 0 : i32
    %c0_i32_0 = arith.constant 0 : i32
    return %arg0, %arg1, %c0_i32 : i32, i32, i32
  }
  func.func @transform_1(%arg0: i32, %arg1: i32) -> (i32, i32) {
    %c0_i32 = arith.constant 0 : i32
    %c0_i32_0 = arith.constant 0 : i32
    %c0_i32_1 = arith.constant 0 : i32
    return %c0_i32, %c0_i32_0 : i32, i32
  }
  func.func @transform_2(%arg0: i32, %arg1: i32) -> (i32, i32) {
    %c0_i32 = arith.constant 0 : i32
    %c0_i32_0 = arith.constant 0 : i32
    %c0_i32_1 = arith.constant 0 : i32
    return %c0_i32, %c0_i32_0 : i32, i32
  }
  func.func @transform_3(%arg0: i32, %arg1: i32) -> (i32, i32) {
    %c0_i32 = arith.constant 0 : i32
    %c0_i32_0 = arith.constant 0 : i32
    %c0_i32_1 = arith.constant 0 : i32
    return %c0_i32, %c0_i32_0 : i32, i32
  }
  func.func @transform_4(%arg0: i32, %arg1: i32) -> (i32, i32) {
    %c0_i32 = arith.constant 0 : i32
    %c0_i32_0 = arith.constant 0 : i32
    %c0_i32_1 = arith.constant 0 : i32
    return %c0_i32, %c0_i32_0 : i32, i32
  }
  func.func @transform_5(%arg0: i32, %arg1: i32) -> (i32, i32) {
    %c0_i32 = arith.constant 0 : i32
    %c0_i32_0 = arith.constant 0 : i32
    return %arg0, %c0_i32 : i32, i32
  }
}

</mosaic_0001>

<llo_original>
// kernel: tpu_custom_call.1
$region0: #{tpu_custom_call.1}
  #allocation0 [shape = 'u32[]', space=smem, size = 0x4, offset = 0x4, fixed_abs, tag = 'smem constant byte address 0x4 - core index']
  #allocation1 [shape = 'u32[72,128]{1,0:T(1,128)}', space=vmem, size = 0x9000, scoped, tag = 'internal scratch']
  #allocation2 [shape = 'f32[2,8,128]{2,1,0:T(8,128)}', space=vmem, size = 0x2000, scoped, tag = 'scratch operand']
  %s0 = inlined_call_operand.hbm [shape: s8[2,96,128], index: 0, kind: input, shape index: {}]
  %s1 = inlined_call_operand.hbm [shape: bf16[128,256], index: 1, kind: input, shape index: {}]
  %s2 = inlined_call_operand.hbm [shape: f32[1,256], index: 2, kind: input, shape index: {}]
  %s3 = inlined_call_operand.hbm [shape: bf16[256,512], index: 3, kind: input, shape index: {}]
  %s4 = inlined_call_operand.hbm [shape: f32[1,512], index: 4, kind: input, shape index: {}]
  %s5 = inlined_call_operand.hbm [shape: f32[2,512], index: 5, kind: output, shape index: {}]
  %s6 = sld [smem:[#allocation0]]
  $region58: #{tpu_custom_call.1} parent=0
    _
  %s8 = ssub.s32 1, %s6
  %s9 = scalar_select 0, %s8, %s6
  $region1: #{tpu_custom_call.1} parent=0
    #allocation3 [shape = 'u8[24576]{0}', space=vmem, size = 0x6000, scoped, tag = 'input window, operand 0, single buffered']
    #allocation4 [shape = 's32[1]{0}', space=sflag, size = 0x4, scoped, tag = 'scoped memory for tpu_custom_call.1']
    #allocation5 [shape = 's32[1]{0}', space=sflag, size = 0x4, scoped, tag = 'scoped memory for tpu_custom_call.1']
    #allocation6 [shape = 'u8[65536]{0}', space=vmem, size = 0x10000, scoped, tag = 'input window, operand 1, single buffered']
    #allocation7 [shape = 's32[1]{0}', space=sflag, size = 0x4, scoped, tag = 'scoped memory for tpu_custom_call.1']
    #allocation8 [shape = 'u8[1024]{0}', space=vmem, size = 0x400, scoped, tag = 'input window, operand 2, single buffered']
    #allocation9 [shape = 'u8[262144]{0}', space=vmem, size = 0x40000, scoped, tag = 'input window, operand 3, single buffered']
    #allocation10 [shape = 's32[1]{0}', space=sflag, size = 0x4, scoped, tag = 'scoped memory for tpu_custom_call.1']
    #allocation11 [shape = 'u8[2048]{0}', space=vmem, size = 0x800, scoped, tag = 'input window, operand 4, single buffered']
    #allocation12 [shape = 'u8[4096]{0}', space=vmem, size = 0x1000, scoped, tag = 'output window, operand 0, single buffered']
    %10 = vsyncpa [#allocation4], 0
    %11 = vsyncpa [#allocation7], 0
    %12 = vsyncpa [#allocation10], 0
    %13 = vsyncpa [#allocation5], 0
    // Predicated region
    $region2: #{tpu_custom_call.1} parent=1 // pred_check
      _
    $region3: #{tpu_custom_call.1} parent=1 // pred_check_branch
      %15 = sbr.rel (0) target = $region5
    $region4: #{tpu_custom_call.1} parent=1 // pred_region
      %17 = vsyncadd [#allocation4], 0
      %s18 = sshll.u32 %s0, 4
      %s19 = int_to_ptr.hbm [resolvable:$true] %s18
      %s20 = sshll.u32 [#allocation3], 4
      %s21 = int_to_ptr.vmem [resolvable:$true] %s20
      %26 = dma.hbm_to_vmem [thread:$0]  %s19, 768, %s21, [#allocation4], 128, 128, 8
    $region5: #{tpu_custom_call.1} parent=1 // pred_fallthru
      _
    // Predicated region
    $region6: #{tpu_custom_call.1} parent=1 // pred_check
      _
    $region7: #{tpu_custom_call.1} parent=1 // pred_check_branch
      %28 = sbr.rel (0) target = $region9
    $region8: #{tpu_custom_call.1} parent=1 // pred_region
      %30 = vsyncadd [#allocation7], 0
      %s31 = sshll.u32 %s1, 4
      %s32 = int_to_ptr.hbm [resolvable:$true] %s31
      %s33 = sshll.u32 [#allocation6], 4
      %s34 = int_to_ptr.vmem [resolvable:$true] %s33
      %39 = dma.hbm_to_vmem [thread:$0]  %s32, 2048, %s34, [#allocation7], 128, 128, 8
    $region9: #{tpu_custom_call.1} parent=1 // pred_fallthru
      _
    // Predicated region
    $region10: #{tpu_custom_call.1} parent=1 // pred_check
      _
    $region11: #{tpu_custom_call.1} parent=1 // pred_check_branch
      %41 = sbr.rel (0) target = $region13
    $region12: #{tpu_custom_call.1} parent=1 // pred_region
      %43 = vsyncadd [#allocation7], 0
      %s45 = sshll.u32 %s2, 4
      %s46 = int_to_ptr.hbm [resolvable:$true] %s45
      %s47 = sshll.u32 [#allocation8], 4
      %s48 = int_to_ptr.vmem [resolvable:$true] %s47
      %50 = dma.hbm_to_vmem [thread:$0]  %s46, 32, %s48, [#allocation7]
    $region13: #{tpu_custom_call.1} parent=1 // pred_fallthru
      _
    // Predicated region
    $region14: #{tpu_custom_call.1} parent=1 // pred_check
      _
    $region15: #{tpu_custom_call.1} parent=1 // pred_check_branch
      %52 = sbr.rel (0) target = $region17
    $region16: #{tpu_custom_call.1} parent=1 // pred_region
      %54 = vsyncadd [#allocation10], 0
      %s55 = sshll.u32 %s3, 4
      %s56 = int_to_ptr.hbm [resolvable:$true] %s55
      %s57 = sshll.u32 [#allocation9], 4
      %s58 = int_to_ptr.vmem [resolvable:$true] %s57
      %63 = dma.hbm_to_vmem [thread:$0]  %s56, 8192, %s58, [#allocation10], 256, 256, 16
    $region17: #{tpu_custom_call.1} parent=1 // pred_fallthru
      _
    // Predicated region
    $region18: #{tpu_custom_call.1} parent=1 // pred_check
      _
    $region19: #{tpu_custom_call.1} parent=1 // pred_check_branch
      %65 = sbr.rel (0) target = $region21
    $region20: #{tpu_custom_call.1} parent=1 // pred_region
      %67 = vsyncadd [#allocation10], 0
      %s69 = sshll.u32 %s4, 4
      %s70 = int_to_ptr.hbm [resolvable:$true] %s69
      %s71 = sshll.u32 [#allocation11], 4
      %s72 = int_to_ptr.vmem [resolvable:$true] %s71
      %74 = dma.hbm_to_vmem [thread:$0]  %s70, 64, %s72, [#allocation10]
    $region21: #{tpu_custom_call.1} parent=1 // pred_fallthru
      _
    // Predicated region
    $region22: #{tpu_custom_call.1} parent=1 // pred_check
      _
    $region23: #{tpu_custom_call.1} parent=1 // pred_check_branch
      %76 = sbr.rel (0) target = $region25
    $region24: #{tpu_custom_call.1} parent=1 // pred_region
      %78 = dma.done [#allocation4], 768
    $region25: #{tpu_custom_call.1} parent=1 // pred_fallthru
      _
    // Predicated region
    $region26: #{tpu_custom_call.1} parent=1 // pred_check
      _
    $region27: #{tpu_custom_call.1} parent=1 // pred_check_branch
      %80 = sbr.rel (0) target = $region29
    $region28: #{tpu_custom_call.1} parent=1 // pred_region
      %82 = dma.done [#allocation7], 2048
    $region29: #{tpu_custom_call.1} parent=1 // pred_fallthru
      _
    // Predicated region
    $region30: #{tpu_custom_call.1} parent=1 // pred_check
      _
    $region31: #{tpu_custom_call.1} parent=1 // pred_check_branch
      %84 = sbr.rel (0) target = $region33
    $region32: #{tpu_custom_call.1} parent=1 // pred_region
      %86 = dma.done [#allocation7], 32
    $region33: #{tpu_custom_call.1} parent=1 // pred_fallthru
      _
    // Predicated region
    $region34: #{tpu_custom_call.1} parent=1 // pred_check
      _
    $region35: #{tpu_custom_call.1} parent=1 // pred_check_branch
      %88 = sbr.rel (0) target = $region37
    $region36: #{tpu_custom_call.1} parent=1 // pred_region
      %90 = dma.done [#allocation10], 8192
    $region37: #{tpu_custom_call.1} parent=1 // pred_fallthru
      _
    // Predicated region
    $region38: #{tpu_custom_call.1} parent=1 // pred_check
      _
    $region39: #{tpu_custom_call.1} parent=1 // pred_check_branch
      %92 = sbr.rel (0) target = $region41
    $region40: #{tpu_custom_call.1} parent=1 // pred_region
      %94 = dma.done [#allocation10], 64
    $region41: #{tpu_custom_call.1} parent=1 // pred_fallthru
      _
    %p97 = scmp.eq.s32.totalorder 0, 0
    // Predicated region
    $region42: #{tpu_custom_call.1} parent=1 // pred_check
      %p98 = pneg %p97
    $region43: #{tpu_custom_call.1} parent=1 // pred_check_branch
      %100 = sbr.rel (%p98) target = $region45
    $region44: #{tpu_custom_call.1} parent=1 // pred_region
      %101 = vst [vmem:[#allocation2] sm:$0xff] 0.0
      %102 = vst [vmem:[#allocation2 + $0x8] sm:$0xff] 0.0
    $region45: #{tpu_custom_call.1} parent=1 // pred_fallthru
      _
    %v103 = vld [vmem:[#allocation3] sm:$0xff]
    %v104 = vld [vmem:[#allocation3 + $0x8] sm:$0xff]
    %v105 = vld [vmem:[#allocation3 + $0x10] sm:$0xff]
    %v106 = vld [vmem:[#allocation3 + $0x18] sm:$0xff]
    %v107 = vld [vmem:[#allocation3 + $0x20] sm:$0xff]
    %v108 = vld [vmem:[#allocation3 + $0x28] sm:$0xff]
    %v109 = vunpack.c.0.s8 %v103
    %v110 = vunpack.c.1.s8 %v103
    %v111 = vunpack.c.2.s8 %v103
    %v112 = vunpack.c.3.s8 %v103
    %v113 = vunpack.c.0.s8 %v104
    %v114 = vunpack.c.1.s8 %v104
    %v115 = vunpack.c.2.s8 %v104
    %v116 = vunpack.c.3.s8 %v104
    %v117 = vunpack.c.0.s8 %v105
    %v118 = vunpack.c.1.s8 %v105
    %v119 = vunpack.c.2.s8 %v105
    %v120 = vunpack.c.3.s8 %v105
    %v121 = vunpack.c.0.s8 %v106
    %v122 = vunpack.c.1.s8 %v106
    %v123 = vunpack.c.2.s8 %v106
    %v124 = vunpack.c.3.s8 %v106
    %v125 = vunpack.c.0.s8 %v107
    %v126 = vunpack.c.1.s8 %v107
    %v127 = vunpack.c.2.s8 %v107
    %v128 = vunpack.c.3.s8 %v107
    %v129 = vunpack.c.0.s8 %v108
    %v130 = vunpack.c.1.s8 %v108
    %v131 = vunpack.c.2.s8 %v108
    %v132 = vunpack.c.3.s8 %v108
    %v133 = vcvt.s32.f32 %v109
    %v134 = vcvt.s32.f32 %v110
    %v135 = vcvt.s32.f32 %v111
    %v136 = vcvt.s32.f32 %v112
    %v137 = vcvt.s32.f32 %v113
    %v138 = vcvt.s32.f32 %v114
    %v139 = vcvt.s32.f32 %v115
    %v140 = vcvt.s32.f32 %v116
    %v141 = vcvt.s32.f32 %v117
    %v142 = vcvt.s32.f32 %v118
    %v143 = vcvt.s32.f32 %v119
    %v144 = vcvt.s32.f32 %v120
    %v145 = vcvt.s32.f32 %v121
    %v146 = vcvt.s32.f32 %v122
    %v147 = vcvt.s32.f32 %v123
    %v148 = vcvt.s32.f32 %v124
    %v149 = vcvt.s32.f32 %v125
    %v150 = vcvt.s32.f32 %v126
    %v151 = vcvt.s32.f32 %v127
    %v152 = vcvt.s32.f32 %v128
    %v153 = vcvt.s32.f32 %v129
    %v154 = vcvt.s32.f32 %v130
    %v155 = vcvt.s32.f32 %v131
    %v156 = vcvt.s32.f32 %v132
    %v157 = vpack.c.bf16 %v133, %v133
    %v158 = vpack.c.bf16 %v134, %v134
    %v159 = vpack.c.bf16 %v135, %v135
    %v160 = vpack.c.bf16 %v136, %v136
    %v161 = vpack.c.bf16 %v137, %v137
    %v162 = vpack.c.bf16 %v138, %v138
    %v163 = vpack.c.bf16 %v139, %v139
    %v164 = vpack.c.bf16 %v140, %v140
    %v165 = vpack.c.bf16 %v141, %v141
    %v166 = vpack.c.bf16 %v142, %v142
    %v167 = vpack.c.bf16 %v143, %v143
    %v168 = vpack.c.bf16 %v144, %v144
    %v169 = vpack.c.bf16 %v145, %v145
    %v170 = vpack.c.bf16 %v146, %v146
    %v171 = vpack.c.bf16 %v147, %v147
    %v172 = vpack.c.bf16 %v148, %v148
    %v173 = vpack.c.bf16 %v149, %v149
    %v174 = vpack.c.bf16 %v150, %v150
    %v175 = vpack.c.bf16 %v151, %v151
    %v176 = vpack.c.bf16 %v152, %v152
    %v177 = vpack.c.bf16 %v153, %v153
    %v178 = vpack.c.bf16 %v154, %v154
    %v179 = vpack.c.bf16 %v155, %v155
    %v180 = vpack.c.bf16 %v156, %v156
    %v181 = vld [vmem:[#allocation2] sm:$0xff]
    %v182 = vld [vmem:[#allocation2 + $0x8] sm:$0xff]
    %v195 = vunpack.c.l.b16 %v157
    %v196 = vunpack.c.l.b16 %v158
    %v197 = vunpack.c.l.b16 %v159
    %v198 = vunpack.c.l.b16 %v160
    %v199 = vunpack.c.l.b16 %v161
    %v200 = vunpack.c.l.b16 %v162
    %v201 = vunpack.c.l.b16 %v163
    %v202 = vunpack.c.l.b16 %v164
    %v203 = vunpack.c.l.b16 %v165
    %v204 = vunpack.c.l.b16 %v166
    %v205 = vunpack.c.l.b16 %v167
    %v206 = vunpack.c.l.b16 %v168
    %v207 = vpack.c.b16 %v196, %v195
    %v208 = vpack.c.b16 %v198, %v197
    %v209 = vpack.c.b16 %v200, %v199
    %v210 = vpack.c.b16 %v202, %v201
    %v211 = vpack.c.b16 %v204, %v203
    %v212 = vpack.c.b16 %v206, %v205
    %vm219 = vcmask 785408
    %v221 = vsel %vm219, 1065369472, 0
    %223 = vmatpush.bf16.msra.mxu0 0
    %224 = vmatpush.bf16.msra.mxu0 0
    %225 = vmatpush.bf16.msra.mxu0 %v212
    %226 = vmatpush.bf16.msra.mxu0 %v211
    %227 = vmatpush.bf16.msra.mxu0 %v210
    %228 = vmatpush.bf16.msra.mxu0 %v209
    %229 = vmatpush.bf16.msra.mxu0 %v208
    %230 = vmatpush.bf16.msra.mxu0 %v207
    %231 = vmatmul.bf16.gmra.mxu0 %v221
    %v232 = vpop.f32.mrf.mxu0
    %v233 = vadd.f32 0.0, %v232
    %v234 = vpop.f32.mrf.mxu0
    %235 = vdwg.mxu0
    %v248 = vunpack.c.l.b16 %v169
    %v249 = vunpack.c.l.b16 %v170
    %v250 = vunpack.c.l.b16 %v171
    %v251 = vunpack.c.l.b16 %v172
    %v252 = vunpack.c.l.b16 %v173
    %v253 = vunpack.c.l.b16 %v174
    %v254 = vunpack.c.l.b16 %v175
    %v255 = vunpack.c.l.b16 %v176
    %v256 = vunpack.c.l.b16 %v177
    %v257 = vunpack.c.l.b16 %v178
    %v258 = vunpack.c.l.b16 %v179
    %v259 = vunpack.c.l.b16 %v180
    %v260 = vpack.c.b16 %v249, %v248
    %v261 = vpack.c.b16 %v251, %v250
    %v262 = vpack.c.b16 %v253, %v252
    %v263 = vpack.c.b16 %v255, %v254
    %v264 = vpack.c.b16 %v257, %v256
    %v265 = vpack.c.b16 %v259, %v258
    %272 = vmatpush.bf16.msra.mxu0 0
    %273 = vmatpush.bf16.msra.mxu0 0
    %274 = vmatpush.bf16.msra.mxu0 %v265
    %275 = vmatpush.bf16.msra.mxu0 %v264
    %276 = vmatpush.bf16.msra.mxu0 %v263
    %277 = vmatpush.bf16.msra.mxu0 %v262
    %278 = vmatpush.bf16.msra.mxu0 %v261
    %279 = vmatpush.bf16.msra.mxu0 %v260
    %280 = vmatmul.bf16.gmra.mxu0 %v221
    %v281 = vpop.f32.mrf.mxu0
    %v282 = vadd.f32 0.0, %v281
    %v283 = vpop.f32.mrf.mxu0
    %284 = vdwg.mxu0
    %v285 = vadd.f32 %v181, %v233
    %v286 = vadd.f32 %v182, %v282
    %287 = vst [vmem:[#allocation2] sm:$0xff] %v285
    %288 = vst [vmem:[#allocation2 + $0x8] sm:$0xff] %v286
    // Predicated region
    $region46: #{tpu_custom_call.1} parent=1 // pred_check
      %p289 = pneg %p97
    $region47: #{tpu_custom_call.1} parent=1 // pred_check_branch
      %291 = sbr.rel (%p289) target = $region49
    $region48: #{tpu_custom_call.1} parent=1 // pred_region
      %v292 = vld [vmem:[#allocation2] sm:$0xff]
      %v293 = vld [vmem:[#allocation2 + $0x8] sm:$0xff]
      %v294 = vmul.f32 %v292, 0.010416667
      %v295 = vmul.f32 %v293, 0.010416667
      %v296 = vpack.c.bf16 %v294, %v294
      %v297 = vpack.c.bf16 %v295, %v295
      %v298 = vld [vmem:[#allocation6] sm:$0xff]
      %v299 = vld [vmem:[#allocation6 + $0x8] sm:$0xff]
      %v300 = vld [vmem:[#allocation6 + $0x10] sm:$0xff]
      %v301 = vld [vmem:[#allocation6 + $0x18] sm:$0xff]
      %v302 = vld [vmem:[#allocation6 + $0x20] sm:$0xff]
      %v303 = vld [vmem:[#allocation6 + $0x28] sm:$0xff]
      %v304 = vld [vmem:[#allocation6 + $0x30] sm:$0xff]
      %v305 = vld [vmem:[#allocation6 + $0x38] sm:$0xff]
      %v306 = vld [vmem:[#allocation6 + $0x40] sm:$0xff]
      %v307 = vld [vmem:[#allocation6 + $0x48] sm:$0xff]
      %v308 = vld [vmem:[#allocation6 + $0x50] sm:$0xff]
      %v309 = vld [vmem:[#allocation6 + $0x58] sm:$0xff]
      %v310 = vld [vmem:[#allocation6 + $0x60] sm:$0xff]
      %v311 = vld [vmem:[#allocation6 + $0x68] sm:$0xff]
      %v312 = vld [vmem:[#allocation6 + $0x70] sm:$0xff]
      %v313 = vld [vmem:[#allocation6 + $0x78] sm:$0xff]
      %v314 = vld [vmem:[#allocation8] sm:$0x3]
      %v316 = vperm.slane %v314, 0
      %v317 = vperm.slane %v314, 1
      %v322 = vunpack.c.l.b16 %v296
      %v323 = vunpack.c.l.b16 %v297
      %v324 = vrot.slane %v323, 7
      %vm325 = vcmask 1041409
      %v326 = vsel %vm325, %v324, %v322
      %v327 = vpack.c.b16 %v326, %v326
      %v345 = vunpack.c.l.b16 %v298
      %v346 = vunpack.c.h.b16 %v298
      %v347 = vunpack.c.l.b16 %v299
      %v348 = vunpack.c.h.b16 %v299
      %v349 = vunpack.c.l.b16 %v300
      %v350 = vunpack.c.h.b16 %v300
      %v351 = vunpack.c.l.b16 %v301
      %v352 = vunpack.c.h.b16 %v301
      %v353 = vunpack.c.l.b16 %v302
      %v354 = vunpack.c.h.b16 %v302
      %v355 = vunpack.c.l.b16 %v303
      %v356 = vunpack.c.h.b16 %v303
      %v357 = vunpack.c.l.b16 %v304
      %v358 = vunpack.c.h.b16 %v304
      %v359 = vunpack.c.l.b16 %v305
      %v360 = vunpack.c.h.b16 %v305
      %v361 = vunpack.c.l.b16 %v306
      %v362 = vunpack.c.h.b16 %v306
      %v363 = vunpack.c.l.b16 %v307
      %v364 = vunpack.c.h.b16 %v307
      %v365 = vunpack.c.l.b16 %v308
      %v366 = vunpack.c.h.b16 %v308
      %v367 = vunpack.c.l.b16 %v309
      %v368 = vunpack.c.h.b16 %v309
      %v369 = vunpack.c.l.b16 %v310
      %v370 = vunpack.c.h.b16 %v310
      %v371 = vunpack.c.l.b16 %v311
      %v372 = vunpack.c.h.b16 %v311
      %v373 = vunpack.c.l.b16 %v312
      %v374 = vunpack.c.h.b16 %v312
      %v375 = vunpack.c.l.b16 %v313
      %v376 = vunpack.c.h.b16 %v313
      %v377 = vpack.c.b16 %v347, %v345
      %v378 = vpack.c.b16 %v348, %v346
      %v379 = vpack.c.b16 %v351, %v349
      %v380 = vpack.c.b16 %v352, %v350
      %v381 = vpack.c.b16 %v355, %v353
      %v382 = vpack.c.b16 %v356, %v354
      %v383 = vpack.c.b16 %v359, %v357
      %v384 = vpack.c.b16 %v360, %v358
      %v385 = vpack.c.b16 %v363, %v361
      %v386 = vpack.c.b16 %v364, %v362
      %v387 = vpack.c.b16 %v367, %v365
      %v388 = vpack.c.b16 %v368, %v366
      %v389 = vpack.c.b16 %v371, %v369
      %v390 = vpack.c.b16 %v372, %v370
      %v391 = vpack.c.b16 %v375, %v373
      %v392 = vpack.c.b16 %v376, %v374
      %409 = vmatpush.bf16.msra.mxu0 %v391
      %410 = vmatpush.bf16.msra.mxu0 %v389
      %411 = vmatpush.bf16.msra.mxu0 %v387
      %412 = vmatpush.bf16.msra.mxu0 %v385
      %413 = vmatpush.bf16.msra.mxu0 %v383
      %414 = vmatpush.bf16.msra.mxu0 %v381
      %415 = vmatpush.bf16.msra.mxu0 %v379
      %416 = vmatpush.bf16.msra.mxu0 %v377
      %417 = vmatmul.bf16.gmra.mxu0 %v327
      %v418 = vpop.f32.mrf.mxu0
      %v419 = vadd.f32 %v316, %v418
      %v420 = vpop.f32.mrf.mxu0
      %421 = vdwg.mxu0
      %422 = vmatpush.bf16.msra.mxu0 %v392
      %423 = vmatpush.bf16.msra.mxu0 %v390
      %424 = vmatpush.bf16.msra.mxu0 %v388
      %425 = vmatpush.bf16.msra.mxu0 %v386
      %426 = vmatpush.bf16.msra.mxu0 %v384
      %427 = vmatpush.bf16.msra.mxu0 %v382
      %428 = vmatpush.bf16.msra.mxu0 %v380
      %429 = vmatpush.bf16.msra.mxu0 %v378
      %430 = vmatmul.bf16.gmra.mxu0 %v327
      %v431 = vpop.f32.mrf.mxu0
      %v432 = vadd.f32 %v317, %v431
      %v433 = vpop.f32.mrf.mxu0
      %434 = vdwg.mxu0
      %v435 = vmax.f32 %v419, 0.0
      %v436 = vmax.f32 %v432, 0.0
      %v437 = vpack.c.bf16 %v435, %v435
      %v438 = vpack.c.bf16 %v436, %v436
      %v439 = vld [vmem:[#allocation9] sm:$0xff]
      %v440 = vld [vmem:[#allocation9 + $0x8] sm:$0xff]
      %v441 = vld [vmem:[#allocation9 + $0x10] sm:$0xff]
      %v442 = vld [vmem:[#allocation9 + $0x18] sm:$0xff]
      %v443 = vld [vmem:[#allocation9 + $0x20] sm:$0xff]
      %v444 = vld [vmem:[#allocation9 + $0x28] sm:$0xff]
      %v445 = vld [vmem:[#allocation9 + $0x30] sm:$0xff]
      %v446 = vld [vmem:[#allocation9 + $0x38] sm:$0xff]
      %v447 = vld [vmem:[#allocation9 + $0x40] sm:$0xff]
      %v448 = vld [vmem:[#allocation9 + $0x48] sm:$0xff]
      %v449 = vld [vmem:[#allocation9 + $0x50] sm:$0xff]
      %v450 = vld [vmem:[#allocation9 + $0x58] sm:$0xff]
      %v451 = vld [vmem:[#allocation9 + $0x60] sm:$0xff]
      %v452 = vld [vmem:[#allocation9 + $0x68] sm:$0xff]
      %v453 = vld [vmem:[#allocation9 + $0x70] sm:$0xff]
      %v454 = vld [vmem:[#allocation9 + $0x78] sm:$0xff]
      %v455 = vld [vmem:[#allocation9 + $0x80] sm:$0xff]
      %v456 = vld [vmem:[#allocation9 + $0x88] sm:$0xff]
      %v457 = vld [vmem:[#allocation9 + $0x90] sm:$0xff]
      %v458 = vld [vmem:[#allocation9 + $0x98] sm:$0xff]
      %v459 = vld [vmem:[#allocation9 + $0xa0] sm:$0xff]
      %v460 = vld [vmem:[#allocation9 + $0xa8] sm:$0xff]
      %v461 = vld [vmem:[#allocation9 + $0xb0] sm:$0xff]
      %v462 = vld [vmem:[#allocation9 + $0xb8] sm:$0xff]
      %v463 = vld [vmem:[#allocation9 + $0xc0] sm:$0xff]
      %v464 = vld [vmem:[#allocation9 + $0xc8] sm:$0xff]
      %v465 = vld [vmem:[#allocation9 + $0xd0] sm:$0xff]
      %v466 = vld [vmem:[#allocation9 + $0xd8] sm:$0xff]
      %v467 = vld [vmem:[#allocation9 + $0xe0] sm:$0xff]
      %v468 = vld [vmem:[#allocation9 + $0xe8] sm:$0xff]
      %v469 = vld [vmem:[#allocation9 + $0xf0] sm:$0xff]
      %v470 = vld [vmem:[#allocation9 + $0xf8] sm:$0xff]
      %v471 = vld [vmem:[#allocation9 + $0x100] sm:$0xff]
      %v472 = vld [vmem:[#allocation9 + $0x108] sm:$0xff]
      %v473 = vld [vmem:[#allocation9 + $0x110] sm:$0xff]
      %v474 = vld [vmem:[#allocation9 + $0x118] sm:$0xff]
      %v475 = vld [vmem:[#allocation9 + $0x120] sm:$0xff]
      %v476 = vld [vmem:[#allocation9 + $0x128] sm:$0xff]
      %v477 = vld [vmem:[#allocation9 + $0x130] sm:$0xff]
      %v478 = vld [vmem:[#allocation9 + $0x138] sm:$0xff]
      %v479 = vld [vmem:[#allocation9 + $0x140] sm:$0xff]
      %v480 = vld [vmem:[#allocation9 + $0x148] sm:$0xff]
      %v481 = vld [vmem:[#allocation9 + $0x150] sm:$0xff]
      %v482 = vld [vmem:[#allocation9 + $0x158] sm:$0xff]
      %v483 = vld [vmem:[#allocation9 + $0x160] sm:$0xff]
      %v484 = vld [vmem:[#allocation9 + $0x168] sm:$0xff]
      %v485 = vld [vmem:[#allocation9 + $0x170] sm:$0xff]
      %v486 = vld [vmem:[#allocation9 + $0x178] sm:$0xff]
      %v487 = vld [vmem:[#allocation9 + $0x180] sm:$0xff]
      %v488 = vld [vmem:[#allocation9 + $0x188] sm:$0xff]
      %v489 = vld [vmem:[#allocation9 + $0x190] sm:$0xff]
      %v490 = vld [vmem:[#allocation9 + $0x198] sm:$0xff]
      %v491 = vld [vmem:[#allocation9 + $0x1a0] sm:$0xff]
      %v492 = vld [vmem:[#allocation9 + $0x1a8] sm:$0xff]
      %v493 = vld [vmem:[#allocation9 + $0x1b0] sm:$0xff]
      %v494 = vld [vmem:[#allocation9 + $0x1b8] sm:$0xff]
      %v495 = vld [vmem:[#allocation9 + $0x1c0] sm:$0xff]
      %v496 = vld [vmem:[#allocation9 + $0x1c8] sm:$0xff]
      %v497 = vld [vmem:[#allocation9 + $0x1d0] sm:$0xff]
      %v498 = vld [vmem:[#allocation9 + $0x1d8] sm:$0xff]
      %v499 = vld [vmem:[#allocation9 + $0x1e0] sm:$0xff]
      %v500 = vld [vmem:[#allocation9 + $0x1e8] sm:$0xff]
      %v501 = vld [vmem:[#allocation9 + $0x1f0] sm:$0xff]
      %v502 = vld [vmem:[#allocation9 + $0x1f8] sm:$0xff]
      %v503 = vld [vmem:[#allocation11] sm:$0xf]
      %v505 = vperm.slane %v503, 0
      %v506 = vperm.slane %v503, 1
      %v507 = vperm.slane %v503, 2
      %v508 = vperm.slane %v503, 3
      %v577 = vunpack.c.l.b16 %v439
      %v578 = vunpack.c.h.b16 %v439
      %v579 = vunpack.c.l.b16 %v440
      %v580 = vunpack.c.h.b16 %v440
      %v581 = vunpack.c.l.b16 %v441
      %v582 = vunpack.c.h.b16 %v441
      %v583 = vunpack.c.l.b16 %v442
      %v584 = vunpack.c.h.b16 %v442
      %v585 = vunpack.c.l.b16 %v443
      %v586 = vunpack.c.h.b16 %v443
      %v587 = vunpack.c.l.b16 %v444
      %v588 = vunpack.c.h.b16 %v444
      %v589 = vunpack.c.l.b16 %v445
      %v590 = vunpack.c.h.b16 %v445
      %v591 = vunpack.c.l.b16 %v446
      %v592 = vunpack.c.h.b16 %v446
      %v593 = vunpack.c.l.b16 %v447
      %v594 = vunpack.c.h.b16 %v447
      %v595 = vunpack.c.l.b16 %v448
      %v596 = vunpack.c.h.b16 %v448
      %v597 = vunpack.c.l.b16 %v449
      %v598 = vunpack.c.h.b16 %v449
      %v599 = vunpack.c.l.b16 %v450
      %v600 = vunpack.c.h.b16 %v450
      %v601 = vunpack.c.l.b16 %v451
      %v602 = vunpack.c.h.b16 %v451
      %v603 = vunpack.c.l.b16 %v452
      %v604 = vunpack.c.h.b16 %v452
      %v605 = vunpack.c.l.b16 %v453
      %v606 = vunpack.c.h.b16 %v453
      %v607 = vunpack.c.l.b16 %v454
      %v608 = vunpack.c.h.b16 %v454
      %v609 = vunpack.c.l.b16 %v455
      %v610 = vunpack.c.h.b16 %v455
      %v611 = vunpack.c.l.b16 %v456
      %v612 = vunpack.c.h.b16 %v456
      %v613 = vunpack.c.l.b16 %v457
      %v614 = vunpack.c.h.b16 %v457
      %v615 = vunpack.c.l.b16 %v458
      %v616 = vunpack.c.h.b16 %v458
      %v617 = vunpack.c.l.b16 %v459
      %v618 = vunpack.c.h.b16 %v459
      %v619 = vunpack.c.l.b16 %v460
      %v620 = vunpack.c.h.b16 %v460
      %v621 = vunpack.c.l.b16 %v461
      %v622 = vunpack.c.h.b16 %v461
      %v623 = vunpack.c.l.b16 %v462
      %v624 = vunpack.c.h.b16 %v462
      %v625 = vunpack.c.l.b16 %v463
      %v626 = vunpack.c.h.b16 %v463
      %v627 = vunpack.c.l.b16 %v464
      %v628 = vunpack.c.h.b16 %v464
      %v629 = vunpack.c.l.b16 %v465
      %v630 = vunpack.c.h.b16 %v465
      %v631 = vunpack.c.l.b16 %v466
      %v632 = vunpack.c.h.b16 %v466
      %v633 = vunpack.c.l.b16 %v467
      %v634 = vunpack.c.h.b16 %v467
      %v635 = vunpack.c.l.b16 %v468
      %v636 = vunpack.c.h.b16 %v468
      %v637 = vunpack.c.l.b16 %v469
      %v638 = vunpack.c.h.b16 %v469
      %v639 = vunpack.c.l.b16 %v470
      %v640 = vunpack.c.h.b16 %v470
      %v641 = vunpack.c.l.b16 %v471
      %v642 = vunpack.c.h.b16 %v471
      %v643 = vunpack.c.l.b16 %v472
      %v644 = vunpack.c.h.b16 %v472
      %v645 = vunpack.c.l.b16 %v473
      %v646 = vunpack.c.h.b16 %v473
      %v647 = vunpack.c.l.b16 %v474
      %v648 = vunpack.c.h.b16 %v474
      %v649 = vunpack.c.l.b16 %v475
      %v650 = vunpack.c.h.b16 %v475
      %v651 = vunpack.c.l.b16 %v476
      %v652 = vunpack.c.h.b16 %v476
      %v653 = vunpack.c.l.b16 %v477
      %v654 = vunpack.c.h.b16 %v477
      %v655 = vunpack.c.l.b16 %v478
      %v656 = vunpack.c.h.b16 %v478
      %v657 = vunpack.c.l.b16 %v479
      %v658 = vunpack.c.h.b16 %v479
      %v659 = vunpack.c.l.b16 %v480
      %v660 = vunpack.c.h.b16 %v480
      %v661 = vunpack.c.l.b16 %v481
      %v662 = vunpack.c.h.b16 %v481
      %v663 = vunpack.c.l.b16 %v482
      %v664 = vunpack.c.h.b16 %v482
      %v665 = vunpack.c.l.b16 %v483
      %v666 = vunpack.c.h.b16 %v483
      %v667 = vunpack.c.l.b16 %v484
      %v668 = vunpack.c.h.b16 %v484
      %v669 = vunpack.c.l.b16 %v485
      %v670 = vunpack.c.h.b16 %v485
      %v671 = vunpack.c.l.b16 %v486
      %v672 = vunpack.c.h.b16 %v486
      %v673 = vunpack.c.l.b16 %v487
      %v674 = vunpack.c.h.b16 %v487
      %v675 = vunpack.c.l.b16 %v488
      %v676 = vunpack.c.h.b16 %v488
      %v677 = vunpack.c.l.b16 %v489
      %v678 = vunpack.c.h.b16 %v489
      %v679 = vunpack.c.l.b16 %v490
      %v680 = vunpack.c.h.b16 %v490
      %v681 = vunpack.c.l.b16 %v491
      %v682 = vunpack.c.h.b16 %v491
      %v683 = vunpack.c.l.b16 %v492
      %v684 = vunpack.c.h.b16 %v492
      %v685 = vunpack.c.l.b16 %v493
      %v686 = vunpack.c.h.b16 %v493
      %v687 = vunpack.c.l.b16 %v494
      %v688 = vunpack.c.h.b16 %v494
      %v689 = vunpack.c.l.b16 %v495
      %v690 = vunpack.c.h.b16 %v495
      %v691 = vunpack.c.l.b16 %v496
      %v692 = vunpack.c.h.b16 %v496
      %v693 = vunpack.c.l.b16 %v497
      %v694 = vunpack.c.h.b16 %v497
      %v695 = vunpack.c.l.b16 %v498
      %v696 = vunpack.c.h.b16 %v498
      %v697 = vunpack.c.l.b16 %v499
      %v698 = vunpack.c.h.b16 %v499
      %v699 = vunpack.c.l.b16 %v500
      %v700 = vunpack.c.h.b16 %v500
      %v701 = vunpack.c.l.b16 %v501
      %v702 = vunpack.c.h.b16 %v501
      %v703 = vunpack.c.l.b16 %v502
      %v704 = vunpack.c.h.b16 %v502
      %v705 = vpack.c.b16 %v581, %v577
      %v706 = vpack.c.b16 %v582, %v578
      %v707 = vpack.c.b16 %v583, %v579
      %v708 = vpack.c.b16 %v584, %v580
      %v709 = vpack.c.b16 %v589, %v585
      %v710 = vpack.c.b16 %v590, %v586
      %v711 = vpack.c.b16 %v591, %v587
      %v712 = vpack.c.b16 %v592, %v588
      %v713 = vpack.c.b16 %v597, %v593
      %v714 = vpack.c.b16 %v598, %v594
      %v715 = vpack.c.b16 %v599, %v595
      %v716 = vpack.c.b16 %v600, %v596
      %v717 = vpack.c.b16 %v605, %v601
      %v718 = vpack.c.b16 %v606, %v602
      %v719 = vpack.c.b16 %v607, %v603
      %v720 = vpack.c.b16 %v608, %v604
      %v721 = vpack.c.b16 %v613, %v609
      %v722 = vpack.c.b16 %v614, %v610
      %v723 = vpack.c.b16 %v615, %v611
      %v724 = vpack.c.b16 %v616, %v612
      %v725 = vpack.c.b16 %v621, %v617
      %v726 = vpack.c.b16 %v622, %v618
      %v727 = vpack.c.b16 %v623, %v619
      %v728 = vpack.c.b16 %v624, %v620
      %v729 = vpack.c.b16 %v629, %v625
      %v730 = vpack.c.b16 %v630, %v626
      %v731 = vpack.c.b16 %v631, %v627
      %v732 = vpack.c.b16 %v632, %v628
      %v733 = vpack.c.b16 %v637, %v633
      %v734 = vpack.c.b16 %v638, %v634
      %v735 = vpack.c.b16 %v639, %v635
      %v736 = vpack.c.b16 %v640, %v636
      %v737 = vpack.c.b16 %v645, %v641
      %v738 = vpack.c.b16 %v646, %v642
      %v739 = vpack.c.b16 %v647, %v643
      %v740 = vpack.c.b16 %v648, %v644
      %v741 = vpack.c.b16 %v653, %v649
      %v742 = vpack.c.b16 %v654, %v650
      %v743 = vpack.c.b16 %v655, %v651
      %v744 = vpack.c.b16 %v656, %v652
      %v745 = vpack.c.b16 %v661, %v657
      %v746 = vpack.c.b16 %v662, %v658
      %v747 = vpack.c.b16 %v663, %v659
      %v748 = vpack.c.b16 %v664, %v660
      %v749 = vpack.c.b16 %v669, %v665
      %v750 = vpack.c.b16 %v670, %v666
      %v751 = vpack.c.b16 %v671, %v667
      %v752 = vpack.c.b16 %v672, %v668
      %v753 = vpack.c.b16 %v677, %v673
      %v754 = vpack.c.b16 %v678, %v674
      %v755 = vpack.c.b16 %v679, %v675
      %v756 = vpack.c.b16 %v680, %v676
      %v757 = vpack.c.b16 %v685, %v681
      %v758 = vpack.c.b16 %v686, %v682
      %v759 = vpack.c.b16 %v687, %v683
      %v760 = vpack.c.b16 %v688, %v684
      %v761 = vpack.c.b16 %v693, %v689
      %v762 = vpack.c.b16 %v694, %v690
      %v763 = vpack.c.b16 %v695, %v691
      %v764 = vpack.c.b16 %v696, %v692
      %v765 = vpack.c.b16 %v701, %v697
      %v766 = vpack.c.b16 %v702, %v698
      %v767 = vpack.c.b16 %v703, %v699
      %v768 = vpack.c.b16 %v704, %v700
      %833 = vmatpush.bf16.msra.mxu0 %v733
      %834 = vmatpush.bf16.msra.mxu0 %v729
      %835 = vmatpush.bf16.msra.mxu0 %v725
      %836 = vmatpush.bf16.msra.mxu0 %v721
      %837 = vmatpush.bf16.msra.mxu0 %v717
      %838 = vmatpush.bf16.msra.mxu0 %v713
      %839 = vmatpush.bf16.msra.mxu0 %v709
      %840 = vmatpush.bf16.msra.mxu0 %v705
      %841 = vmatmul.bf16.gmra.mxu0 %v437
      %v842 = vpop.f32.mrf.mxu0
      %v843 = vadd.f32 %v505, %v842
      %v844 = vpop.f32.mrf.mxu0
      %845 = vdwg.mxu0
      %846 = vmatpush.bf16.msra.mxu0 %v765
      %847 = vmatpush.bf16.msra.mxu0 %v761
      %848 = vmatpush.bf16.msra.mxu0 %v757
      %849 = vmatpush.bf16.msra.mxu0 %v753
      %850 = vmatpush.bf16.msra.mxu0 %v749
      %851 = vmatpush.bf16.msra.mxu0 %v745
      %852 = vmatpush.bf16.msra.mxu0 %v741
      %853 = vmatpush.bf16.msra.mxu0 %v737
      %854 = vmatmul.bf16.gmra.mxu0 %v438
      %v855 = vpop.f32.mrf.mxu0
      %v856 = vadd.f32 %v843, %v855
      %v857 = vpop.f32.mrf.mxu0
      %858 = vdwg.mxu0
      %859 = vmatpush.bf16.msra.mxu0 %v734
      %860 = vmatpush.bf16.msra.mxu0 %v730
      %861 = vmatpush.bf16.msra.mxu0 %v726
      %862 = vmatpush.bf16.msra.mxu0 %v722
      %863 = vmatpush.bf16.msra.mxu0 %v718
      %864 = vmatpush.bf16.msra.mxu0 %v714
      %865 = vmatpush.bf16.msra.mxu0 %v710
      %866 = vmatpush.bf16.msra.mxu0 %v706
      %867 = vmatmul.bf16.gmra.mxu0 %v437
      %v868 = vpop.f32.mrf.mxu0
      %v869 = vadd.f32 %v506, %v868
      %v870 = vpop.f32.mrf.mxu0
      %871 = vdwg.mxu0
      %872 = vmatpush.bf16.msra.mxu0 %v766
      %873 = vmatpush.bf16.msra.mxu0 %v762
      %874 = vmatpush.bf16.msra.mxu0 %v758
      %875 = vmatpush.bf16.msra.mxu0 %v754
      %876 = vmatpush.bf16.msra.mxu0 %v750
      %877 = vmatpush.bf16.msra.mxu0 %v746
      %878 = vmatpush.bf16.msra.mxu0 %v742
      %879 = vmatpush.bf16.msra.mxu0 %v738
      %880 = vmatmul.bf16.gmra.mxu0 %v438
      %v881 = vpop.f32.mrf.mxu0
      %v882 = vadd.f32 %v869, %v881
      %v883 = vpop.f32.mrf.mxu0
      %884 = vdwg.mxu0
      %885 = vmatpush.bf16.msra.mxu0 %v735
      %886 = vmatpush.bf16.msra.mxu0 %v731
      %887 = vmatpush.bf16.msra.mxu0 %v727
      %888 = vmatpush.bf16.msra.mxu0 %v723
      %889 = vmatpush.bf16.msra.mxu0 %v719
      %890 = vmatpush.bf16.msra.mxu0 %v715
      %891 = vmatpush.bf16.msra.mxu0 %v711
      %892 = vmatpush.bf16.msra.mxu0 %v707
      %893 = vmatmul.bf16.gmra.mxu0 %v437
      %v894 = vpop.f32.mrf.mxu0
      %v895 = vadd.f32 %v507, %v894
      %v896 = vpop.f32.mrf.mxu0
      %897 = vdwg.mxu0
      %898 = vmatpush.bf16.msra.mxu0 %v767
      %899 = vmatpush.bf16.msra.mxu0 %v763
      %900 = vmatpush.bf16.msra.mxu0 %v759
      %901 = vmatpush.bf16.msra.mxu0 %v755
      %902 = vmatpush.bf16.msra.mxu0 %v751
      %903 = vmatpush.bf16.msra.mxu0 %v747
      %904 = vmatpush.bf16.msra.mxu0 %v743
      %905 = vmatpush.bf16.msra.mxu0 %v739
      %906 = vmatmul.bf16.gmra.mxu0 %v438
      %v907 = vpop.f32.mrf.mxu0
      %v908 = vadd.f32 %v895, %v907
      %v909 = vpop.f32.mrf.mxu0
      %910 = vdwg.mxu0
      %911 = vmatpush.bf16.msra.mxu0 %v736
      %912 = vmatpush.bf16.msra.mxu0 %v732
      %913 = vmatpush.bf16.msra.mxu0 %v728
      %914 = vmatpush.bf16.msra.mxu0 %v724
      %915 = vmatpush.bf16.msra.mxu0 %v720
      %916 = vmatpush.bf16.msra.mxu0 %v716
      %917 = vmatpush.bf16.msra.mxu0 %v712
      %918 = vmatpush.bf16.msra.mxu0 %v708
      %919 = vmatmul.bf16.gmra.mxu0 %v437
      %v920 = vpop.f32.mrf.mxu0
      %v921 = vadd.f32 %v508, %v920
      %v922 = vpop.f32.mrf.mxu0
      %923 = vdwg.mxu0
      %924 = vmatpush.bf16.msra.mxu0 %v768
      %925 = vmatpush.bf16.msra.mxu0 %v764
      %926 = vmatpush.bf16.msra.mxu0 %v760
      %927 = vmatpush.bf16.msra.mxu0 %v756
      %928 = vmatpush.bf16.msra.mxu0 %v752
      %929 = vmatpush.bf16.msra.mxu0 %v748
      %930 = vmatpush.bf16.msra.mxu0 %v744
      %931 = vmatpush.bf16.msra.mxu0 %v740
      %932 = vmatmul.bf16.gmra.mxu0 %v438
      %v933 = vpop.f32.mrf.mxu0
      %v934 = vadd.f32 %v921, %v933
      %v935 = vpop.f32.mrf.mxu0
      %936 = vdwg.mxu0
      %v941 = vrot.slane %v882, 6
      %v942 = vrot.slane %v908, 4
      %v943 = vrot.slane %v934, 2
      %vm944 = vcmask 1041408
      %v945 = vsel %vm944, %v856, %v941
      %vm946 = vcmask 1045508
      %v947 = vsel %vm946, %v942, %v943
      %vm948 = vcmask 1043456
      %v949 = vsel %vm948, %v945, %v947
      %951 = vst [vmem:[#allocation12] sm:$0xff] %v949
    $region49: #{tpu_custom_call.1} parent=1 // pred_fallthru
      _
    // Predicated region
    $region50: #{tpu_custom_call.1} parent=1 // pred_check
      _
    $region51: #{tpu_custom_call.1} parent=1 // pred_check_branch
      %953 = sbr.rel (0) target = $region53
    $region52: #{tpu_custom_call.1} parent=1 // pred_region
      %955 = vsyncadd [#allocation5], 0
      %s957 = sshll.u32 [#allocation12], 4
      %s958 = int_to_ptr.vmem [resolvable:$true] %s957
      %s959 = sshll.u32 %s5, 4
      %s960 = int_to_ptr.hbm [resolvable:$true] %s959
      %962 = dma.vmem_to_hbm [thread:$0]  %s958, 128, %s960, [#allocation5]
    $region53: #{tpu_custom_call.1} parent=1 // pred_fallthru
      _
    // Predicated region
    $region54: #{tpu_custom_call.1} parent=1 // pred_check
      _
    $region55: #{tpu_custom_call.1} parent=1 // pred_check_branch
      %964 = sbr.rel (0) target = $region57
    $region56: #{tpu_custom_call.1} parent=1 // pred_region
      %966 = dma.done [#allocation5], 128
    $region57: #{tpu_custom_call.1} parent=1 // pred_fallthru
      _
    %967 = vsyncpa [#allocation4], 1
    %968 = vsyncpa [#allocation7], 1
    %969 = vsyncpa [#allocation10], 1
    %970 = vsyncpa [#allocation5], 1

</llo_original>
